<compile_context>
chip_gen: v7x
topology: tpu7x:2x2x1
jax: 0.10.0
libtpu: 0.0.40
codegen_flags: <defaults>
</compile_context>

<pallas_src>
import functools
import math

import jax
import jax.numpy as jnp
from jax.experimental import pallas as pl
from jax.experimental.pallas import tpu as pltpu


# --------------------------------------------------------------------------- #
# helpers
# --------------------------------------------------------------------------- #
def _round_up(x, m):
    return (x + m - 1) // m * m


def _sublane_pack(dtype):
    """Rows per packed sublane group for a compute dtype (8/f32, 16/bf16, 32/i8)."""
    return max(8, 32 // jnp.dtype(dtype).itemsize)


def _choose_tile(total, cap, unit):
    """Largest divisor of `total` that is a multiple of `unit` and <= cap."""
    assert total % unit == 0, (total, unit)
    if total <= cap:
        return total
    d = (cap // unit) * unit
    while d >= unit:
        if total % d == 0:
            return d
        d -= unit
    return unit


# --------------------------------------------------------------------------- #
# kernels
# --------------------------------------------------------------------------- #
def _rnn_cell_kernel_fast(x_ref, wih_ref, h_ref, whh_ref, b_ref, out_ref, *, act):
    """Whole contraction in one shot: no scratch, no K grid, direct store."""
    acc = jnp.dot(x_ref[...], wih_ref[...], preferred_element_type=jnp.float32)
    acc = acc + jnp.dot(h_ref[...], whh_ref[...], preferred_element_type=jnp.float32)
    out_ref[...] = act(acc + b_ref[...]).astype(out_ref.dtype)


def _rnn_cell_kernel_ktiled(x_ref, wih_ref, h_ref, whh_ref, b_ref, out_ref,
                            acc_ref, *, act, nki):
    """K-tiled path: k in [0, nki) is the x@Wih phase, k >= nki the h@Whh phase.

    NOTE: correctness relies on the K (reduction) axis being the LAST grid
    axis so each (i, j) output tile sees its full k sweep before the output
    block index changes.  Do not reorder the grid / dimension_semantics.
    """
    k = pl.program_id(2)

    @pl.when(k == 0)
    def _init():
        # Bias folded into the accumulator init (removes the epilogue add and
        # a per-step bias stream dependency).
        acc_ref[...] = jnp.broadcast_to(b_ref[...], acc_ref.shape)

    @pl.when(k < nki)
    def _x_phase():
        acc_ref[...] += jnp.dot(x_ref[...], wih_ref[...],
                                preferred_element_type=jnp.float32)

    @pl.when(k >= nki)
    def _h_phase():
        acc_ref[...] += jnp.dot(h_ref[...], whh_ref[...],
                                preferred_element_type=jnp.float32)

    @pl.when(k == pl.num_programs(2) - 1)
    def _finish():
        out_ref[...] = act(acc_ref[...]).astype(out_ref.dtype)


# --------------------------------------------------------------------------- #
# parameter preparation (call ONCE, outside any time loop)
# --------------------------------------------------------------------------- #
def prepare_params(wih, whh, bih, bhh, *, param_dtype=None):
    """Pad weights to lane-dense shapes, fold bih+bhh, cast once.

    param_dtype (e.g. jnp.bfloat16) sets the MXU operand dtype for BOTH the
    weights and (inside the kernel call) x/h; accumulation, bias add and the
    activation stay f32.
    """
    I, H = wih.shape
    assert whh.shape == (H, H) and bih.shape == (H,) and bhh.shape == (H,)
    Ip = _round_up(I, 128)
    Hp = _round_up(H, 128)
    w_dtype = param_dtype if param_dtype is not None else wih.dtype

    wih_p = jnp.pad(wih.astype(w_dtype), ((0, Ip - I), (0, Hp - H)))
    whh_p = jnp.pad(whh.astype(w_dtype), ((0, Hp - H), (0, Hp - H)))
    b_p = jnp.pad((bih + bhh).astype(jnp.float32), (0, Hp - H)).reshape(1, Hp)

    return dict(wih=wih_p, whh=whh_p, b=b_p,
                I=I, H=H, Ip=Ip, Hp=Hp, dtype=jnp.dtype(w_dtype))


def pad_inputs(x, h, params):
    """Pad x -> (Bp, Ip), h -> (Bp, Hp) once; the padded state can be carried
    across timesteps (padded weight rows are zero, so padded h columns never
    contaminate valid outputs)."""
    B = x.shape[0]
    I, H, Ip, Hp = params["I"], params["H"], params["Ip"], params["Hp"]
    assert x.shape == (B, I) and h.shape == (B, H)
    pack = _sublane_pack(params["dtype"])
    Bp = _round_up(B, pack)
    x_p = jnp.pad(x, ((0, Bp - B), (0, Ip - I)))
    h_p = jnp.pad(h, ((0, Bp - B), (0, Hp - H)))
    return x_p, h_p


# --------------------------------------------------------------------------- #
# per-step cell on padded operands
# --------------------------------------------------------------------------- #
def rnn_cell_padded(x_p, h_p, params, *, act=jnp.tanh, out_dtype=None,
                    tb_max=256, tn_max=512, tk_max=2048):
    """One RNN-cell step on padded inputs; returns padded (Bp, Hp) new state.

    Default tile caps keep the double-buffered VMEM footprint <= ~40 MiB
    (safe on v7x's 64 MiB); v5e/v6e (128 MiB VMEM) can raise tn_max/tk_max.
    """
    Ip, Hp = params["Ip"], params["Hp"]
    cdt = params["dtype"]
    Bp = x_p.shape[0]
    assert x_p.shape == (Bp, Ip), (x_p.shape, Ip)
    assert h_p.shape == (Bp, Hp), (h_p.shape, Hp)
    if out_dtype is None:
        out_dtype = h_p.dtype

    xc = x_p.astype(cdt)
    hc = h_p.astype(cdt)
    wih_p, whh_p, b_p = params["wih"], params["whh"], params["b"]

    # ---- tile selection --------------------------------------------------- #
    pack = _sublane_pack(cdt)
    tb = _choose_tile(Bp, max(tb_max, pack), pack)
    tn = _choose_tile(Hp, max(tn_max, 128), 128)
    nb = Bp // tb
    # v7x megacore: ensure at least one "parallel" axis has >= 2 tiles so both
    # TensorCores get work (costs nothing on single-TC v5e/v6e).
    if nb == 1 and Hp // tn == 1 and Hp >= 256:
        tn = _choose_tile(Hp, Hp // 2, 128)
    nn = Hp // tn

    isize = cdt.itemsize
    osize = jnp.dtype(out_dtype).itemsize

    fast = (Ip <= tk_max) and (Hp <= tk_max)
    if fast:
        grid = (nb, nn)
        in_specs = [
            pl.BlockSpec((tb, Ip), lambda i, j: (i, 0)),   # x
            pl.BlockSpec((Ip, tn), lambda i, j: (0, j)),   # Wih
            pl.BlockSpec((tb, Hp), lambda i, j: (i, 0)),   # h
            pl.BlockSpec((Hp, tn), lambda i, j: (0, j)),   # Whh
            pl.BlockSpec((1, tn), lambda i, j: (0, j)),    # folded bias (f32)
        ]
        out_spec = pl.BlockSpec((tb, tn), lambda i, j: (i, j))
        scratch = []
        kernel = functools.partial(_rnn_cell_kernel_fast, act=act)
        dim_sem = ("parallel", "parallel")
        needed = (2 * (tb * Ip + Ip * tn + tb * Hp + Hp * tn) * isize
                  + 2 * tn * 4 + 2 * tb * tn * osize)
    else:
        tk = _choose_tile(math.gcd(Ip, Hp), max(tk_max, 128), 128)
        nki, nkh = Ip // tk, Hp // tk
        grid = (nb, nn, nki + nkh)
        # Clamped index maps: during the x phase the h/Whh block indices stay
        # constant (no re-DMA); during the h phase the x/Wih indices stay
        # constant — so weight blocks are fetched exactly once per (i, j).
        in_specs = [
            pl.BlockSpec((tb, tk), lambda i, j, k, n=nki: (i, jnp.minimum(k, n - 1))),
            pl.BlockSpec((tk, tn), lambda i, j, k, n=nki: (jnp.minimum(k, n - 1), j)),
            pl.BlockSpec((tb, tk), lambda i, j, k, n=nki: (i, jnp.maximum(k - n, 0))),
            pl.BlockSpec((tk, tn), lambda i, j, k, n=nki: (jnp.maximum(k - n, 0), j)),
            pl.BlockSpec((1, tn), lambda i, j, k: (0, j)),
        ]
        out_spec = pl.BlockSpec((tb, tn), lambda i, j, k: (i, j))
        scratch = [pltpu.VMEM((tb, tn), jnp.float32)]
        kernel = functools.partial(_rnn_cell_kernel_ktiled, act=act, nki=nki)
        dim_sem = ("parallel", "parallel", "arbitrary")   # K (reduction) LAST.
        needed = (2 * (2 * tb * tk + 2 * tk * tn) * isize
                  + 2 * tn * 4 + 2 * tb * tn * osize + tb * tn * 4)

    vmem_limit = int(min(max(needed + (8 << 20), 32 << 20), 64 << 20))

    out = pl.pallas_call(
        kernel,
        out_shape=jax.ShapeDtypeStruct((Bp, Hp), out_dtype),
        grid_spec=pltpu.PrefetchScalarGridSpec(
            num_scalar_prefetch=0,
            grid=grid,
            in_specs=in_specs,
            out_specs=out_spec,
            scratch_shapes=scratch,
        ),
        compiler_params=pltpu.CompilerParams(
            dimension_semantics=dim_sem,
            vmem_limit_bytes=vmem_limit),
    )(xc, wih_p, hc, whh_p, b_p)
    return out


# --------------------------------------------------------------------------- #
# one-shot convenience API (matches the PyTorch module's forward exactly)
# --------------------------------------------------------------------------- #
def rnn_cell(x, h, wih, whh, bih, bhh, *, act=jnp.tanh, param_dtype=None,
             tb_max=256, tn_max=512, tk_max=2048):
    """h_new = act(x @ Wih + bih + h @ Whh + bhh).

    Convenience single-call API; for a time loop, call prepare_params() once
    and rnn_cell_padded() per step (padded state carried across steps).
    """
    B, _ = x.shape
    H = wih.shape[1]
    params = prepare_params(wih, whh, bih, bhh, param_dtype=param_dtype)
    x_p, h_p = pad_inputs(x, h, params)
    out_p = rnn_cell_padded(x_p, h_p, params, act=act, out_dtype=x.dtype,
                            tb_max=tb_max, tn_max=tn_max, tk_max=tk_max)
    return out_p[:B, :H]


def rnn_cell_ref(x, h, wih, whh, bih, bhh, act=jnp.tanh):
    # Pure-JAX reference of the PyTorch forward.
    return act(x @ wih + bih + h @ whh + bhh)


# --------------------------------------------------------------------------- #
# demo / correctness checks
# --------------------------------------------------------------------------- #
if __name__ == "__main__":
    key = jax.random.PRNGKey(0)
    k_x, k_h, k_wih, k_whh, k_bih, k_bhh, k_x2, k_h2, k_w1, k_w2, k_b1, k_b2 = (
        jax.random.split(key, 12))

    # ---- Test 1: module-equivalent one-shot call (fast path, f32) ---------- #
    batch, input_size, hidden_size = 8, 16, 32
    x = jax.random.normal(k_x, (batch, input_size), jnp.float32)
    h = jax.random.normal(k_h, (batch, hidden_size), jnp.float32)
    wih = jax.random.normal(k_wih, (input_size, hidden_size), jnp.float32) * 0.1
    whh = jax.random.normal(k_whh, (hidden_size, hidden_size), jnp.float32) * 0.1
    bih = jax.random.normal(k_bih, (hidden_size,), jnp.float32) * 0.1
    bhh = jax.random.normal(k_bhh, (hidden_size,), jnp.float32) * 0.1

    ref = rnn_cell_ref(x, h, wih, whh, bih, bhh)
    out = rnn_cell(x, h, wih, whh, bih, bhh)
    jax.block_until_ready(out)
    assert out.shape == (batch, hidden_size)
    assert jnp.allclose(out, ref, atol=1e-5, rtol=1e-5), "f32 one-shot mismatch"

    # ---- Test 2: recommended usage — prepare once, padded state carried ---- #
    params = prepare_params(wih, whh, bih, bhh)
    x_p, h_p = pad_inputs(x, h, params)
    h_ref_state = h
    for _ in range(3):
        h_p = rnn_cell_padded(x_p, h_p, params)         # stays padded (Bp, Hp)
        h_ref_state = rnn_cell_ref(x, h_ref_state, wih, whh, bih, bhh)
    jax.block_until_ready(h_p)
    assert jnp.allclose(h_p[:batch, :hidden_size], h_ref_state,
                        atol=1e-4, rtol=1e-4), "padded multi-step mismatch"

    # ---- Test 3: bf16 MXU-operand path (halves weight HBM bytes) ----------- #
    out_bf16 = rnn_cell(x, h, wih, whh, bih, bhh, param_dtype=jnp.bfloat16)
    jax.block_until_ready(out_bf16)
    assert jnp.allclose(out_bf16, ref, atol=3e-2, rtol=3e-2), "bf16 mismatch"

    # ---- Test 4: general K-tiled path (forced via a small tk cap) ---------- #
    B2, I2, H2 = 16, 256, 384
    x2 = jax.random.normal(k_x2, (B2, I2), jnp.float32)
    h2 = jax.random.normal(k_h2, (B2, H2), jnp.float32)
    wih2 = jax.random.normal(k_w1, (I2, H2), jnp.float32) * 0.05
    whh2 = jax.random.normal(k_w2, (H2, H2), jnp.float32) * 0.05
    bih2 = jax.random.normal(k_b1, (H2,), jnp.float32) * 0.1
    bhh2 = jax.random.normal(k_b2, (H2,), jnp.float32) * 0.1
    ref2 = rnn_cell_ref(x2, h2, wih2, whh2, bih2, bhh2)
    out2 = rnn_cell(x2, h2, wih2, whh2, bih2, bhh2, tk_max=128)
    jax.block_until_ready(out2)
    assert jnp.allclose(out2, ref2, atol=1e-4, rtol=1e-4), "K-tiled mismatch"

    print("KERNEL_OK")
</pallas_src>

<mosaic_0001>
module attributes {stable_mosaic.version = 11 : i64} {
  func.func @_rnn_cell_kernel_fast(%arg0: i32, %arg1: i32, %arg2: memref<8x128xf32, #tpu.memory_space<vmem>>, %arg3: memref<128x128xf32, #tpu.memory_space<vmem>>, %arg4: memref<8x128xf32, #tpu.memory_space<vmem>>, %arg5: memref<128x128xf32, #tpu.memory_space<vmem>>, %arg6: memref<1x128xf32, #tpu.memory_space<vmem>>, %arg7: memref<8x128xf32, #tpu.memory_space<vmem>>) attributes {dimension_semantics = [#tpu.dimension_semantics<parallel>, #tpu.dimension_semantics<parallel>], iteration_bounds = array<i64: 1, 1>, scalar_prefetch = 0 : i64, scratch_operands = 0 : i64, tpu.core_type = #tpu.core_type<tc>, window_params = [{transform_indices = @transform_0, window_bounds = array<i64: 8, 128>}, {transform_indices = @transform_1, window_bounds = array<i64: 128, 128>}, {transform_indices = @transform_2, window_bounds = array<i64: 8, 128>}, {transform_indices = @transform_3, window_bounds = array<i64: 128, 128>}, {transform_indices = @transform_4, window_bounds = array<i64: 1, 128>}, {transform_indices = @transform_5, window_bounds = array<i64: 8, 128>}]} {
    %c0 = arith.constant 0 : index
    %c0_0 = arith.constant 0 : index
    %0 = vector.load %arg2[%c0, %c0_0] : memref<8x128xf32, #tpu.memory_space<vmem>>, vector<8x128xf32>
    %c0_1 = arith.constant 0 : index
    %c0_2 = arith.constant 0 : index
    %1 = vector.load %arg3[%c0_1, %c0_2] : memref<128x128xf32, #tpu.memory_space<vmem>>, vector<128x128xf32>
    %cst = arith.constant dense<0.000000e+00> : vector<8x128xf32>
    %2 = tpu.matmul %0, %1, %cst {dimension_numbers = #tpu.dot_dimension_numbers<[1], [0], [0], [1], [0, 0, 1, 1], [], []>} : vector<8x128xf32>, vector<128x128xf32>, vector<8x128xf32> -> vector<8x128xf32>
    %c0_3 = arith.constant 0 : index
    %c0_4 = arith.constant 0 : index
    %3 = vector.load %arg4[%c0_3, %c0_4] : memref<8x128xf32, #tpu.memory_space<vmem>>, vector<8x128xf32>
    %c0_5 = arith.constant 0 : index
    %c0_6 = arith.constant 0 : index
    %4 = vector.load %arg5[%c0_5, %c0_6] : memref<128x128xf32, #tpu.memory_space<vmem>>, vector<128x128xf32>
    %cst_7 = arith.constant dense<0.000000e+00> : vector<8x128xf32>
    %5 = tpu.matmul %3, %4, %cst_7 {dimension_numbers = #tpu.dot_dimension_numbers<[1], [0], [0], [1], [0, 0, 1, 1], [], []>} : vector<8x128xf32>, vector<128x128xf32>, vector<8x128xf32> -> vector<8x128xf32>
    %6 = arith.addf %2, %5 : vector<8x128xf32>
    %c0_8 = arith.constant 0 : index
    %c0_9 = arith.constant 0 : index
    %7 = vector.load %arg6[%c0_8, %c0_9] : memref<1x128xf32, #tpu.memory_space<vmem>>, vector<1x128xf32>
    %8 = vector.broadcast %7 : vector<1x128xf32> to vector<8x128xf32>
    %9 = arith.addf %6, %8 : vector<8x128xf32>
    %10 = math.tanh %9 : vector<8x128xf32>
    %c0_10 = arith.constant 0 : index
    %c0_11 = arith.constant 0 : index
    %11 = vector.load %arg7[%c0_10, %c0_11] : memref<8x128xf32, #tpu.memory_space<vmem>>, vector<8x128xf32>
    tpu.vector_store %arg7[%c0_10, %c0_11], %10 {strides = array<i32>} : memref<8x128xf32, #tpu.memory_space<vmem>>, vector<8x128xf32>,
    return
  }
  func.func @transform_0(%arg0: i32, %arg1: i32) -> (i32, i32) {
    %c0_i32 = arith.constant 0 : i32
    %c0_i32_0 = arith.constant 0 : i32
    return %arg0, %c0_i32 : i32, i32
  }
  func.func @transform_1(%arg0: i32, %arg1: i32) -> (i32, i32) {
    %c0_i32 = arith.constant 0 : i32
    %c0_i32_0 = arith.constant 0 : i32
    return %c0_i32, %arg1 : i32, i32
  }
  func.func @transform_2(%arg0: i32, %arg1: i32) -> (i32, i32) {
    %c0_i32 = arith.constant 0 : i32
    %c0_i32_0 = arith.constant 0 : i32
    return %arg0, %c0_i32 : i32, i32
  }
  func.func @transform_3(%arg0: i32, %arg1: i32) -> (i32, i32) {
    %c0_i32 = arith.constant 0 : i32
    %c0_i32_0 = arith.constant 0 : i32
    return %c0_i32, %arg1 : i32, i32
  }
  func.func @transform_4(%arg0: i32, %arg1: i32) -> (i32, i32) {
    %c0_i32 = arith.constant 0 : i32
    %c0_i32_0 = arith.constant 0 : i32
    return %c0_i32, %arg1 : i32, i32
  }
  func.func @transform_5(%arg0: i32, %arg1: i32) -> (i32, i32) {
    %c0_i32 = arith.constant 0 : i32
    return %arg0, %arg1 : i32, i32
  }
}

</mosaic_0001>

<llo_original>
// kernel: tpu_custom_call.1
$region0: #{tpu_custom_call.1}
  #allocation0 [shape = 'u32[]', space=smem, size = 0x4, offset = 0x4, fixed_abs, tag = 'smem constant byte address 0x4 - core index']
  #allocation1 [shape = 'u32[144,128]{1,0:T(1,128)}', space=vmem, size = 0x12000, scoped, tag = 'internal scratch']
  %s0 = inlined_call_operand.hbm [shape: f32[8,128], index: 0, kind: input, shape index: {}]
  %s1 = inlined_call_operand.hbm [shape: f32[128,128], index: 1, kind: input, shape index: {}]
  %s2 = inlined_call_operand.hbm [shape: f32[8,128], index: 2, kind: input, shape index: {}]
  %s3 = inlined_call_operand.hbm [shape: f32[128,128], index: 3, kind: input, shape index: {}]
  %s4 = inlined_call_operand.vmem [shape: f32[1,128], index: 4, kind: input, shape index: {}]
  %s5 = inlined_call_operand.hbm [shape: f32[8,128], index: 5, kind: output, shape index: {}]
  %s6 = sld [smem:[#allocation0]]
  $region46: #{tpu_custom_call.1} parent=0
    _
  %s8 = ssub.s32 1, %s6
  %s9 = scalar_select 0, %s8, %s6
  $region1: #{tpu_custom_call.1} parent=0
    #allocation2 [shape = 'u8[4096]{0}', space=vmem, size = 0x1000, scoped, tag = 'input window, operand 0, single buffered']
    #allocation3 [shape = 's32[1]{0}', space=sflag, size = 0x4, scoped, tag = 'scoped memory for tpu_custom_call.1']
    #allocation4 [shape = 's32[1]{0}', space=sflag, size = 0x4, scoped, tag = 'scoped memory for tpu_custom_call.1']
    #allocation5 [shape = 'u8[65536]{0}', space=vmem, size = 0x10000, scoped, tag = 'input window, operand 1, single buffered']
    #allocation6 [shape = 's32[1]{0}', space=sflag, size = 0x4, scoped, tag = 'scoped memory for tpu_custom_call.1']
    #allocation7 [shape = 'u8[4096]{0}', space=vmem, size = 0x1000, scoped, tag = 'input window, operand 2, single buffered']
    #allocation8 [shape = 'u8[65536]{0}', space=vmem, size = 0x10000, scoped, tag = 'input window, operand 3, single buffered']
    #allocation9 [shape = 's32[1]{0}', space=sflag, size = 0x4, scoped, tag = 'scoped memory for tpu_custom_call.1']
    #allocation10 [shape = 'u8[4096]{0}', space=vmem, size = 0x1000, scoped, tag = 'output window, operand 0, single buffered']
    %10 = vsyncpa [#allocation3], 0
    %11 = vsyncpa [#allocation6], 0
    %12 = vsyncpa [#allocation9], 0
    %13 = vsyncpa [#allocation4], 0
    // Predicated region
    $region2: #{tpu_custom_call.1} parent=1 // pred_check
      _
    $region3: #{tpu_custom_call.1} parent=1 // pred_check_branch
      %15 = sbr.rel (0) target = $region5
    $region4: #{tpu_custom_call.1} parent=1 // pred_region
      %s17 = ssub.s32 128, 128
      %18 = vsyncadd [#allocation3], %s17
      %s20 = sshll.u32 [#allocation2], 4
      %s21 = int_to_ptr.vmem [resolvable:$true] %s20
      %23 = dma.hbm_to_vmem [thread:$0]  %s0, 128, %s21, [#allocation3]
    $region5: #{tpu_custom_call.1} parent=1 // pred_fallthru
      _
    // Predicated region
    $region6: #{tpu_custom_call.1} parent=1 // pred_check
      _
    $region7: #{tpu_custom_call.1} parent=1 // pred_check_branch
      %25 = sbr.rel (0) target = $region9
    $region8: #{tpu_custom_call.1} parent=1 // pred_region
      %s27 = ssub.s32 2048, 2048
      %28 = vsyncadd [#allocation6], %s27
      %s29 = sshll.u32 [#allocation5], 4
      %s30 = int_to_ptr.vmem [resolvable:$true] %s29
      %35 = dma.hbm_to_vmem [thread:$0]  %s1, 2048, %s30, [#allocation6], 128, 128, 8
    $region9: #{tpu_custom_call.1} parent=1 // pred_fallthru
      _
    // Predicated region
    $region10: #{tpu_custom_call.1} parent=1 // pred_check
      _
    $region11: #{tpu_custom_call.1} parent=1 // pred_check_branch
      %37 = sbr.rel (0) target = $region13
    $region12: #{tpu_custom_call.1} parent=1 // pred_region
      %s39 = ssub.s32 128, 128
      %40 = vsyncadd [#allocation6], %s39
      %s42 = sshll.u32 [#allocation7], 4
      %s43 = int_to_ptr.vmem [resolvable:$true] %s42
      %45 = dma.hbm_to_vmem [thread:$0]  %s2, 128, %s43, [#allocation6]
    $region13: #{tpu_custom_call.1} parent=1 // pred_fallthru
      _
    // Predicated region
    $region14: #{tpu_custom_call.1} parent=1 // pred_check
      _
    $region15: #{tpu_custom_call.1} parent=1 // pred_check_branch
      %47 = sbr.rel (0) target = $region17
    $region16: #{tpu_custom_call.1} parent=1 // pred_region
      %s49 = ssub.s32 2048, 2048
      %50 = vsyncadd [#allocation9], %s49
      %s51 = sshll.u32 [#allocation8], 4
      %s52 = int_to_ptr.vmem [resolvable:$true] %s51
      %57 = dma.hbm_to_vmem [thread:$0]  %s3, 2048, %s52, [#allocation9], 128, 128, 8
    $region17: #{tpu_custom_call.1} parent=1 // pred_fallthru
      _
    // Predicated region
    $region18: #{tpu_custom_call.1} parent=1 // pred_check
      _
    $region19: #{tpu_custom_call.1} parent=1 // pred_check_branch
      %59 = sbr.rel (0) target = $region21
    $region20: #{tpu_custom_call.1} parent=1 // pred_region
      _
    $region21: #{tpu_custom_call.1} parent=1 // pred_fallthru
      _
    // Predicated region
    $region22: #{tpu_custom_call.1} parent=1 // pred_check
      _
    $region23: #{tpu_custom_call.1} parent=1 // pred_check_branch
      %61 = sbr.rel (0) target = $region25
    $region24: #{tpu_custom_call.1} parent=1 // pred_region
      %62 = dma.done [#allocation3], 128
    $region25: #{tpu_custom_call.1} parent=1 // pred_fallthru
      _
    // Predicated region
    $region26: #{tpu_custom_call.1} parent=1 // pred_check
      _
    $region27: #{tpu_custom_call.1} parent=1 // pred_check_branch
      %64 = sbr.rel (0) target = $region29
    $region28: #{tpu_custom_call.1} parent=1 // pred_region
      %65 = dma.done [#allocation6], 2048
    $region29: #{tpu_custom_call.1} parent=1 // pred_fallthru
      _
    // Predicated region
    $region30: #{tpu_custom_call.1} parent=1 // pred_check
      _
    $region31: #{tpu_custom_call.1} parent=1 // pred_check_branch
      %67 = sbr.rel (0) target = $region33
    $region32: #{tpu_custom_call.1} parent=1 // pred_region
      %68 = dma.done [#allocation6], 128
    $region33: #{tpu_custom_call.1} parent=1 // pred_fallthru
      _
    // Predicated region
    $region34: #{tpu_custom_call.1} parent=1 // pred_check
      _
    $region35: #{tpu_custom_call.1} parent=1 // pred_check_branch
      %70 = sbr.rel (0) target = $region37
    $region36: #{tpu_custom_call.1} parent=1 // pred_region
      %71 = dma.done [#allocation9], 2048
    $region37: #{tpu_custom_call.1} parent=1 // pred_fallthru
      _
    %v72 = vld [vmem:[#allocation2] sm:$0xff]
    %v73 = vld [vmem:[#allocation5] sm:$0xff]
    %v74 = vld [vmem:[#allocation5 + $0x8] sm:$0xff]
    %v75 = vld [vmem:[#allocation5 + $0x10] sm:$0xff]
    %v76 = vld [vmem:[#allocation5 + $0x18] sm:$0xff]
    %v77 = vld [vmem:[#allocation5 + $0x20] sm:$0xff]
    %v78 = vld [vmem:[#allocation5 + $0x28] sm:$0xff]
    %v79 = vld [vmem:[#allocation5 + $0x30] sm:$0xff]
    %v80 = vld [vmem:[#allocation5 + $0x38] sm:$0xff]
    %v81 = vld [vmem:[#allocation5 + $0x40] sm:$0xff]
    %v82 = vld [vmem:[#allocation5 + $0x48] sm:$0xff]
    %v83 = vld [vmem:[#allocation5 + $0x50] sm:$0xff]
    %v84 = vld [vmem:[#allocation5 + $0x58] sm:$0xff]
    %v85 = vld [vmem:[#allocation5 + $0x60] sm:$0xff]
    %v86 = vld [vmem:[#allocation5 + $0x68] sm:$0xff]
    %v87 = vld [vmem:[#allocation5 + $0x70] sm:$0xff]
    %v88 = vld [vmem:[#allocation5 + $0x78] sm:$0xff]
    %v89 = vld [vmem:[#allocation7] sm:$0xff]
    %v90 = vld [vmem:[#allocation8] sm:$0xff]
    %v91 = vld [vmem:[#allocation8 + $0x8] sm:$0xff]
    %v92 = vld [vmem:[#allocation8 + $0x10] sm:$0xff]
    %v93 = vld [vmem:[#allocation8 + $0x18] sm:$0xff]
    %v94 = vld [vmem:[#allocation8 + $0x20] sm:$0xff]
    %v95 = vld [vmem:[#allocation8 + $0x28] sm:$0xff]
    %v96 = vld [vmem:[#allocation8 + $0x30] sm:$0xff]
    %v97 = vld [vmem:[#allocation8 + $0x38] sm:$0xff]
    %v98 = vld [vmem:[#allocation8 + $0x40] sm:$0xff]
    %v99 = vld [vmem:[#allocation8 + $0x48] sm:$0xff]
    %v100 = vld [vmem:[#allocation8 + $0x50] sm:$0xff]
    %v101 = vld [vmem:[#allocation8 + $0x58] sm:$0xff]
    %v102 = vld [vmem:[#allocation8 + $0x60] sm:$0xff]
    %v103 = vld [vmem:[#allocation8 + $0x68] sm:$0xff]
    %v104 = vld [vmem:[#allocation8 + $0x70] sm:$0xff]
    %v105 = vld [vmem:[#allocation8 + $0x78] sm:$0xff]
    %106 = vmatprep.subr.mxu0 0.0
    %107 = vmatpush1.msra.mxu0 %v90
    %108 = vmatprep.subr.mxu0 0.0
    %109 = vmatpush1.msra.mxu0 %v91
    %110 = vmatprep.subr.mxu0 0.0
    %111 = vmatpush1.msra.mxu0 %v92
    %112 = vmatprep.subr.mxu0 0.0
    %113 = vmatpush1.msra.mxu0 %v93
    %114 = vmatprep.subr.mxu0 0.0
    %115 = vmatpush1.msra.mxu0 %v94
    %116 = vmatprep.subr.mxu0 0.0
    %117 = vmatpush1.msra.mxu0 %v95
    %118 = vmatprep.subr.mxu0 0.0
    %119 = vmatpush1.msra.mxu0 %v96
    %120 = vmatprep.subr.mxu0 0.0
    %121 = vmatpush1.msra.mxu0 %v97
    %122 = vmatprep.subr.mxu0 0.0
    %123 = vmatpush1.msra.mxu0 %v98
    %124 = vmatprep.subr.mxu0 0.0
    %125 = vmatpush1.msra.mxu0 %v99
    %126 = vmatprep.subr.mxu0 0.0
    %127 = vmatpush1.msra.mxu0 %v100
    %128 = vmatprep.subr.mxu0 0.0
    %129 = vmatpush1.msra.mxu0 %v101
    %130 = vmatprep.subr.mxu0 0.0
    %131 = vmatpush1.msra.mxu0 %v102
    %132 = vmatprep.subr.mxu0 0.0
    %133 = vmatpush1.msra.mxu0 %v103
    %134 = vmatprep.subr.mxu0 0.0
    %135 = vmatpush1.msra.mxu0 %v104
    %136 = vmatprep.subr.mxu0 0.0
    %137 = vmatpush1.msra.mxu0 %v105
    %138 = vmatprep.subr.mxu0 0.0
    %139 = vmatpush1.msra.mxu0 0.0
    %140 = vmatprep.subr.mxu0 0.0
    %141 = vmatpush1.msra.mxu0 0.0
    %142 = vmatprep.subr.mxu0 0.0
    %143 = vmatpush1.msra.mxu0 0.0
    %144 = vmatprep.subr.mxu0 0.0
    %145 = vmatpush1.msra.mxu0 0.0
    %146 = vmatprep.subr.mxu0 0.0
    %147 = vmatpush1.msra.mxu0 0.0
    %148 = vmatprep.subr.mxu0 0.0
    %149 = vmatpush1.msra.mxu0 0.0
    %150 = vmatprep.subr.mxu0 0.0
    %151 = vmatpush1.msra.mxu0 0.0
    %152 = vmatprep.subr.mxu0 0.0
    %153 = vmatpush1.msra.mxu0 0.0
    %154 = vmatprep.subr.mxu0 0.0
    %155 = vmatpush1.msra.mxu0 0.0
    %156 = vmatprep.subr.mxu0 0.0
    %157 = vmatpush1.msra.mxu0 0.0
    %158 = vmatprep.subr.mxu0 0.0
    %159 = vmatpush1.msra.mxu0 0.0
    %160 = vmatprep.subr.mxu0 0.0
    %161 = vmatpush1.msra.mxu0 0.0
    %162 = vmatprep.subr.mxu0 0.0
    %163 = vmatpush1.msra.mxu0 0.0
    %164 = vmatprep.subr.mxu0 0.0
    %165 = vmatpush1.msra.mxu0 0.0
    %166 = vmatprep.subr.mxu0 0.0
    %167 = vmatpush1.msra.mxu0 0.0
    %168 = vmatprep.subr.mxu0 0.0
    %169 = vmatpush1.msra.mxu0 0.0
    %170 = vmatprep.mubr.f32.mxu0 0.0
    %171 = vmatmul.mubr.f32.gmra.mrb[0].mxu0 %v89
    %v172 = vpop.f32.mrb[0].mxu0
    %v173 = vadd.f32 0.0, %v172
    %v174 = vpop.f32.mrb[0].mxu0
    %175 = vdwg.mxu0
    %176 = vmatprep.subr.mxu0 0.0
    %177 = vmatpush1.msra.mxu0 %v73
    %178 = vmatprep.subr.mxu0 0.0
    %179 = vmatpush1.msra.mxu0 %v74
    %180 = vmatprep.subr.mxu0 0.0
    %181 = vmatpush1.msra.mxu0 %v75
    %182 = vmatprep.subr.mxu0 0.0
    %183 = vmatpush1.msra.mxu0 %v76
    %184 = vmatprep.subr.mxu0 0.0
    %185 = vmatpush1.msra.mxu0 %v77
    %186 = vmatprep.subr.mxu0 0.0
    %187 = vmatpush1.msra.mxu0 %v78
    %188 = vmatprep.subr.mxu0 0.0
    %189 = vmatpush1.msra.mxu0 %v79
    %190 = vmatprep.subr.mxu0 0.0
    %191 = vmatpush1.msra.mxu0 %v80
    %192 = vmatprep.subr.mxu0 0.0
    %193 = vmatpush1.msra.mxu0 %v81
    %194 = vmatprep.subr.mxu0 0.0
    %195 = vmatpush1.msra.mxu0 %v82
    %196 = vmatprep.subr.mxu0 0.0
    %197 = vmatpush1.msra.mxu0 %v83
    %198 = vmatprep.subr.mxu0 0.0
    %199 = vmatpush1.msra.mxu0 %v84
    %200 = vmatprep.subr.mxu0 0.0
    %201 = vmatpush1.msra.mxu0 %v85
    %202 = vmatprep.subr.mxu0 0.0
    %203 = vmatpush1.msra.mxu0 %v86
    %204 = vmatprep.subr.mxu0 0.0
    %205 = vmatpush1.msra.mxu0 %v87
    %206 = vmatprep.subr.mxu0 0.0
    %207 = vmatpush1.msra.mxu0 %v88
    %208 = vmatprep.subr.mxu0 0.0
    %209 = vmatpush1.msra.mxu0 0.0
    %210 = vmatprep.subr.mxu0 0.0
    %211 = vmatpush1.msra.mxu0 0.0
    %212 = vmatprep.subr.mxu0 0.0
    %213 = vmatpush1.msra.mxu0 0.0
    %214 = vmatprep.subr.mxu0 0.0
    %215 = vmatpush1.msra.mxu0 0.0
    %216 = vmatprep.subr.mxu0 0.0
    %217 = vmatpush1.msra.mxu0 0.0
    %218 = vmatprep.subr.mxu0 0.0
    %219 = vmatpush1.msra.mxu0 0.0
    %220 = vmatprep.subr.mxu0 0.0
    %221 = vmatpush1.msra.mxu0 0.0
    %222 = vmatprep.subr.mxu0 0.0
    %223 = vmatpush1.msra.mxu0 0.0
    %224 = vmatprep.subr.mxu0 0.0
    %225 = vmatpush1.msra.mxu0 0.0
    %226 = vmatprep.subr.mxu0 0.0
    %227 = vmatpush1.msra.mxu0 0.0
    %228 = vmatprep.subr.mxu0 0.0
    %229 = vmatpush1.msra.mxu0 0.0
    %230 = vmatprep.subr.mxu0 0.0
    %231 = vmatpush1.msra.mxu0 0.0
    %232 = vmatprep.subr.mxu0 0.0
    %233 = vmatpush1.msra.mxu0 0.0
    %234 = vmatprep.subr.mxu0 0.0
    %235 = vmatpush1.msra.mxu0 0.0
    %236 = vmatprep.subr.mxu0 0.0
    %237 = vmatpush1.msra.mxu0 0.0
    %238 = vmatprep.subr.mxu0 0.0
    %239 = vmatpush1.msra.mxu0 0.0
    %240 = vmatprep.mubr.f32.mxu0 0.0
    %241 = vmatmul.mubr.f32.gmra.mrb[0].mxu0 %v72
    %v242 = vpop.f32.mrb[0].mxu0
    %v243 = vadd.f32 %v173, %v242
    %v244 = vpop.f32.mrb[0].mxu0
    %245 = vdwg.mxu0
    %v246 = vld [vmem:[%s4] sm:$0x1]
    %v248 = vlaneseq
    %v249 = vshrl.u32 %v248, 7
    %v250 = vsub.s32 0, %v249
    %v251 = vrot.slane %v246, %v250
    %v253 = vadd.f32 %v243, %v251
    %v254 = vtanh.pop %v253
    %255 = vst [vmem:[#allocation10] sm:$0xff] %v254
    // Predicated region
    $region38: #{tpu_custom_call.1} parent=1 // pred_check
      _
    $region39: #{tpu_custom_call.1} parent=1 // pred_check_branch
      %257 = sbr.rel (0) target = $region41
    $region40: #{tpu_custom_call.1} parent=1 // pred_region
      %s259 = ssub.s32 128, 128
      %260 = vsyncadd [#allocation4], %s259
      %s262 = sshll.u32 [#allocation10], 4
      %s263 = int_to_ptr.vmem [resolvable:$true] %s262
      %265 = dma.vmem_to_hbm [thread:$0]  %s263, 128, %s5, [#allocation4]
    $region41: #{tpu_custom_call.1} parent=1 // pred_fallthru
      _
    // Predicated region
    $region42: #{tpu_custom_call.1} parent=1 // pred_check
      _
    $region43: #{tpu_custom_call.1} parent=1 // pred_check_branch
      %267 = sbr.rel (0) target = $region45
    $region44: #{tpu_custom_call.1} parent=1 // pred_region
      %268 = dma.done [#allocation4], 128
    $region45: #{tpu_custom_call.1} parent=1 // pred_fallthru
      _
    %269 = vsyncpa [#allocation3], 1
    %270 = vsyncpa [#allocation6], 1
    %271 = vsyncpa [#allocation9], 1
    %272 = vsyncpa [#allocation4], 1

</llo_original>
